<compile_context>
chip_gen: v5e
topology: v5e:2x2
jax: 0.10.0
libtpu: 0.0.40
codegen_flags: <defaults>
</compile_context>

<pallas_src>
import functools

import jax
import jax.numpy as jnp
import numpy as np
from jax import lax
from jax.experimental import pallas as pl
from jax.experimental.pallas import tpu as pltpu

HIDDEN = 50
INPUT_SIZE = 1
OUTPUT_SIZE = 1

LANE = 128                 # one vreg lane block per gate
HP = 128                   # padded hidden size (full lane block)
NG = 4
G4 = NG * LANE             # 512 = padded 4*H
S3 = 3 * LANE              # 384 = end of the sigmoid (i,f,o) region

# PyTorch gate order in nn.LSTM weights is [i, f, g, o]; kernel layout is [i, f, o, g]
# so the three sigmoid gates are contiguous and tanh(g) is the last block.
_TORCH_GATE_IDX = {"i": 0, "f": 1, "g": 2, "o": 3}
_KERNEL_GATE_ORDER = ("i", "f", "o", "g")


def lstm_kernel(x_ref, wih_ref, whh_ref, b_ref, wlin_ref, blin_ref, out_ref):
    """Full LSTM recurrence + final linear projection (single invocation, no grid).

    x_ref    : (T, 1)     f32 in VMEM   (per-step input, input_size == 1)
    wih_ref  : (1, 512)   f32 in VMEM   (input weights; i/f/o columns pre-scaled 0.5)
    whh_ref  : (128, 512) f32 in VMEM   (recurrent weights, zero-padded, pre-scaled)
    b_ref    : (1, 512)   f32 in VMEM   (b_ih + b_hh, zero-padded, pre-scaled)
    wlin_ref : (1, 128)   f32 in VMEM   (final linear weights, zero-padded)
    blin_ref : (1, 1)     f32 in VMEM
    out_ref  : (1, 1)     f32 in VMEM
    """
    T = x_ref.shape[0]

    wih = wih_ref[...]          # (1, 512)
    whh = whh_ref[...]          # (128, 512)
    b = b_ref[...]              # (1, 512)

    # Prologue: all T input+bias terms in one full-sublane-occupancy pass,
    # entirely off the serial recurrence chain.
    xwb = x_ref[...] * wih + b  # (T, 512)

    def activate(gates):
        # Single EUP dispatch over all 512 lanes; sigmoid recovered on the VPU via
        # sigmoid(x) = 0.5*(tanh(x/2)+1) (the x/2 is baked into the weights/bias).
        t_all = jnp.tanh(gates)                       # (1, 512)
        ifo = 0.5 * t_all[:, 0:S3] + 0.5              # (1, 384)
        i = ifo[:, 0:LANE]
        f = ifo[:, LANE:2 * LANE]
        o = ifo[:, 2 * LANE:S3]
        g = t_all[:, S3:G4]
        return i, f, o, g

    # Peeled step 0: h0 == c0 == 0, so h@whh == 0 and f*c == 0.
    i, f, o, g = activate(xwb[0:1, :])
    c = i * g
    h = o * jnp.tanh(c)

    # Unrolled recurrence, steps 1..T-1.  Static row slices of xwb; invariant whh.
    for t in range(1, T):
        gates = xwb[t:t + 1, :] + jnp.dot(h, whh, preferred_element_type=jnp.float32)
        i, f, o, g = activate(gates)
        c = f * c + i * g
        h = o * jnp.tanh(c)

    # Final linear layer on the last hidden state (padded lanes of h/wlin are zero).
    pred = jnp.sum(h * wlin_ref[...], axis=-1, keepdims=True) + blin_ref[...]
    out_ref[...] = pred


def prepare_params(params):
    """One-time conversion of PyTorch-layout params into kernel-ready padded layouts.

    Also applies the 0.5 pre-scale to the i/f/o columns of wih, whh and the combined
    bias so the kernel can use a single tanh for all four gates.  Do this once at
    init and cache the result; the per-call path has zero layout work.
    """
    w_ih, w_hh, b_ih, b_hh, w_lin, b_lin = [np.asarray(p, np.float32) for p in params]
    H = HIDDEN

    wih_vec = np.zeros((1, G4), np.float32)
    whh_pad = np.zeros((HP, G4), np.float32)
    b_pad = np.zeros((1, G4), np.float32)
    for k, gname in enumerate(_KERNEL_GATE_ORDER):
        gi = _TORCH_GATE_IDX[gname]
        rows = slice(gi * H, (gi + 1) * H)
        cols = slice(k * LANE, k * LANE + H)
        wih_vec[0, cols] = w_ih[rows, 0]                # input_size == 1
        whh_pad[:H, cols] = w_hh[rows, :].T             # (H_in, H_gate_out)
        b_pad[0, cols] = b_ih[rows] + b_hh[rows]

    # sigmoid(x) = 0.5*(tanh(x/2)+1): pre-scale the i/f/o gate pre-activations by 0.5
    # (applied consistently to wih, whh AND bias; NOT to the g block).
    sig_scale = np.ones((1, G4), np.float32)
    sig_scale[0, :S3] = 0.5
    wih_vec *= sig_scale
    whh_pad *= sig_scale
    b_pad *= sig_scale

    wlin_pad = np.zeros((1, HP), np.float32)
    wlin_pad[0, :H] = w_lin[0, :]
    blin = np.asarray(b_lin, np.float32).reshape(1, 1)

    return (jnp.asarray(wih_vec), jnp.asarray(whh_pad), jnp.asarray(b_pad),
            jnp.asarray(wlin_pad), jnp.asarray(blin))


@jax.jit
def lstm_model_forward(input_seq, prepped):
    """input_seq: (T,) float32. prepped: output of prepare_params().
    Returns (1,) float32, matching PyTorch predictions[-1]."""
    wih, whh, b, wlin, blin = prepped
    vmem = pl.BlockSpec(memory_space=pltpu.MemorySpace.VMEM)
    x = input_seq.astype(jnp.float32).reshape(-1, 1)    # (T, 1) VMEM table
    out = pl.pallas_call(
        lstm_kernel,
        out_shape=jax.ShapeDtypeStruct((1, 1), jnp.float32),
        in_specs=[vmem, vmem, vmem, vmem, vmem, vmem],
        out_specs=vmem,
    )(x, wih, whh, b, wlin, blin)
    return out.reshape(OUTPUT_SIZE)


def init_params(key, hidden=HIDDEN, input_size=INPUT_SIZE, output_size=OUTPUT_SIZE):
    """Deterministic init matching PyTorch nn.LSTM / nn.Linear default uniform(-k, k)."""
    k = 1.0 / np.sqrt(hidden)
    ks = jax.random.split(key, 6)
    w_ih = jax.random.uniform(ks[0], (4 * hidden, input_size), jnp.float32, -k, k)
    w_hh = jax.random.uniform(ks[1], (4 * hidden, hidden), jnp.float32, -k, k)
    b_ih = jax.random.uniform(ks[2], (4 * hidden,), jnp.float32, -k, k)
    b_hh = jax.random.uniform(ks[3], (4 * hidden,), jnp.float32, -k, k)
    w_lin = jax.random.uniform(ks[4], (output_size, hidden), jnp.float32, -k, k)
    b_lin = jax.random.uniform(ks[5], (output_size,), jnp.float32, -k, k)
    return (w_ih, w_hh, b_ih, b_hh, w_lin, b_lin)


def lstm_model_reference(input_seq, params):
    """Pure-JAX reference of the same forward pass (PyTorch gate order), for validation."""
    w_ih, w_hh, b_ih, b_hh, w_lin, b_lin = params
    H = HIDDEN
    x = input_seq.reshape(-1, INPUT_SIZE).astype(jnp.float32)
    h = jnp.zeros((H,), jnp.float32)
    c = jnp.zeros((H,), jnp.float32)
    for t in range(x.shape[0]):
        gates = w_ih @ x[t] + b_ih + w_hh @ h + b_hh
        i = jax.nn.sigmoid(gates[0:H])
        f = jax.nn.sigmoid(gates[H:2 * H])
        g = jnp.tanh(gates[2 * H:3 * H])
        o = jax.nn.sigmoid(gates[3 * H:4 * H])
        c = f * c + i * g
        h = o * jnp.tanh(c)
    return w_lin @ h + b_lin


if __name__ == "__main__":
    key = jax.random.PRNGKey(0)
    k_param, k_x = jax.random.split(key)

    params = init_params(k_param)
    prepped = prepare_params(params)          # one-time, cached kernel-ready layouts

    T = 8  # sequence length
    input_seq = jax.random.uniform(k_x, (T,), jnp.float32)  # MinMax-scaled values in [0, 1)

    pred = lstm_model_forward(input_seq, prepped)
    jax.block_until_ready(pred)

    ref = lstm_model_reference(input_seq, params)
    np.testing.assert_allclose(np.asarray(pred), np.asarray(ref), rtol=1e-3, atol=1e-3)

    print("KERNEL_OK")
</pallas_src>

<mosaic_0001>
module attributes {stable_mosaic.version = 11 : i64} {
  func.func @lstm_kernel(%arg0: memref<8x1xf32, #tpu.memory_space<vmem>>, %arg1: memref<1x512xf32, #tpu.memory_space<vmem>>, %arg2: memref<128x512xf32, #tpu.memory_space<vmem>>, %arg3: memref<1x512xf32, #tpu.memory_space<vmem>>, %arg4: memref<1x128xf32, #tpu.memory_space<vmem>>, %arg5: memref<1x1xf32, #tpu.memory_space<vmem>>, %arg6: memref<1x1xf32, #tpu.memory_space<vmem>>) attributes {dimension_semantics = [], scalar_prefetch = 0 : i64, scratch_operands = 0 : i64, tpu.core_type = #tpu.core_type<tc>} {
    %c0 = arith.constant 0 : index
    %c0_0 = arith.constant 0 : index
    %0 = vector.load %arg1[%c0, %c0_0] : memref<1x512xf32, #tpu.memory_space<vmem>>, vector<1x512xf32>
    %c0_1 = arith.constant 0 : index
    %c0_2 = arith.constant 0 : index
    %1 = vector.load %arg2[%c0_1, %c0_2] : memref<128x512xf32, #tpu.memory_space<vmem>>, vector<128x512xf32>
    %c0_3 = arith.constant 0 : index
    %c0_4 = arith.constant 0 : index
    %2 = vector.load %arg3[%c0_3, %c0_4] : memref<1x512xf32, #tpu.memory_space<vmem>>, vector<1x512xf32>
    %c0_5 = arith.constant 0 : index
    %c0_6 = arith.constant 0 : index
    %3 = vector.load %arg0[%c0_5, %c0_6] : memref<8x1xf32, #tpu.memory_space<vmem>>, vector<8x1xf32>
    %4 = vector.broadcast %3 : vector<8x1xf32> to vector<8x512xf32>
    %5 = vector.broadcast %0 : vector<1x512xf32> to vector<8x512xf32>
    %6 = arith.mulf %4, %5 : vector<8x512xf32>
    %7 = vector.broadcast %2 : vector<1x512xf32> to vector<8x512xf32>
    %8 = arith.addf %6, %7 : vector<8x512xf32>
    %9 = vector.extract_strided_slice %8 {offsets = [0, 0], sizes = [1, 512], strides = [1, 1]} : vector<8x512xf32> to vector<1x512xf32>
    %10 = math.tanh %9 : vector<1x512xf32>
    %11 = vector.extract_strided_slice %10 {offsets = [0, 0], sizes = [1, 384], strides = [1, 1]} : vector<1x512xf32> to vector<1x384xf32>
    %cst = arith.constant 5.000000e-01 : f32
    %12 = vector.broadcast %cst : f32 to vector<1x384xf32>
    %13 = arith.mulf %12, %11 : vector<1x384xf32>
    %cst_7 = arith.constant 5.000000e-01 : f32
    %14 = vector.broadcast %cst_7 : f32 to vector<1x384xf32>
    %15 = arith.addf %13, %14 : vector<1x384xf32>
    %16 = vector.extract_strided_slice %15 {offsets = [0, 0], sizes = [1, 128], strides = [1, 1]} : vector<1x384xf32> to vector<1x128xf32>
    %17 = vector.extract_strided_slice %15 {offsets = [0, 256], sizes = [1, 128], strides = [1, 1]} : vector<1x384xf32> to vector<1x128xf32>
    %18 = vector.extract_strided_slice %10 {offsets = [0, 384], sizes = [1, 128], strides = [1, 1]} : vector<1x512xf32> to vector<1x128xf32>
    %19 = arith.mulf %16, %18 : vector<1x128xf32>
    %20 = math.tanh %19 : vector<1x128xf32>
    %21 = arith.mulf %17, %20 : vector<1x128xf32>
    %22 = vector.extract_strided_slice %8 {offsets = [1, 0], sizes = [1, 512], strides = [1, 1]} : vector<8x512xf32> to vector<1x512xf32>
    %cst_8 = arith.constant dense<0.000000e+00> : vector<1x512xf32>
    %23 = tpu.matmul %21, %1, %cst_8 {dimension_numbers = #tpu.dot_dimension_numbers<[1], [0], [0], [1], [0, 0, 1, 1], [], []>} : vector<1x128xf32>, vector<128x512xf32>, vector<1x512xf32> -> vector<1x512xf32>
    %24 = arith.addf %22, %23 : vector<1x512xf32>
    %25 = math.tanh %24 : vector<1x512xf32>
    %26 = vector.extract_strided_slice %25 {offsets = [0, 0], sizes = [1, 384], strides = [1, 1]} : vector<1x512xf32> to vector<1x384xf32>
    %cst_9 = arith.constant 5.000000e-01 : f32
    %27 = vector.broadcast %cst_9 : f32 to vector<1x384xf32>
    %28 = arith.mulf %27, %26 : vector<1x384xf32>
    %cst_10 = arith.constant 5.000000e-01 : f32
    %29 = vector.broadcast %cst_10 : f32 to vector<1x384xf32>
    %30 = arith.addf %28, %29 : vector<1x384xf32>
    %31 = vector.extract_strided_slice %30 {offsets = [0, 0], sizes = [1, 128], strides = [1, 1]} : vector<1x384xf32> to vector<1x128xf32>
    %32 = vector.extract_strided_slice %30 {offsets = [0, 128], sizes = [1, 128], strides = [1, 1]} : vector<1x384xf32> to vector<1x128xf32>
    %33 = vector.extract_strided_slice %30 {offsets = [0, 256], sizes = [1, 128], strides = [1, 1]} : vector<1x384xf32> to vector<1x128xf32>
    %34 = vector.extract_strided_slice %25 {offsets = [0, 384], sizes = [1, 128], strides = [1, 1]} : vector<1x512xf32> to vector<1x128xf32>
    %35 = arith.mulf %32, %19 : vector<1x128xf32>
    %36 = arith.mulf %31, %34 : vector<1x128xf32>
    %37 = arith.addf %35, %36 : vector<1x128xf32>
    %38 = math.tanh %37 : vector<1x128xf32>
    %39 = arith.mulf %33, %38 : vector<1x128xf32>
    %40 = vector.extract_strided_slice %8 {offsets = [2, 0], sizes = [1, 512], strides = [1, 1]} : vector<8x512xf32> to vector<1x512xf32>
    %cst_11 = arith.constant dense<0.000000e+00> : vector<1x512xf32>
    %41 = tpu.matmul %39, %1, %cst_11 {dimension_numbers = #tpu.dot_dimension_numbers<[1], [0], [0], [1], [0, 0, 1, 1], [], []>} : vector<1x128xf32>, vector<128x512xf32>, vector<1x512xf32> -> vector<1x512xf32>
    %42 = arith.addf %40, %41 : vector<1x512xf32>
    %43 = math.tanh %42 : vector<1x512xf32>
    %44 = vector.extract_strided_slice %43 {offsets = [0, 0], sizes = [1, 384], strides = [1, 1]} : vector<1x512xf32> to vector<1x384xf32>
    %cst_12 = arith.constant 5.000000e-01 : f32
    %45 = vector.broadcast %cst_12 : f32 to vector<1x384xf32>
    %46 = arith.mulf %45, %44 : vector<1x384xf32>
    %cst_13 = arith.constant 5.000000e-01 : f32
    %47 = vector.broadcast %cst_13 : f32 to vector<1x384xf32>
    %48 = arith.addf %46, %47 : vector<1x384xf32>
    %49 = vector.extract_strided_slice %48 {offsets = [0, 0], sizes = [1, 128], strides = [1, 1]} : vector<1x384xf32> to vector<1x128xf32>
    %50 = vector.extract_strided_slice %48 {offsets = [0, 128], sizes = [1, 128], strides = [1, 1]} : vector<1x384xf32> to vector<1x128xf32>
    %51 = vector.extract_strided_slice %48 {offsets = [0, 256], sizes = [1, 128], strides = [1, 1]} : vector<1x384xf32> to vector<1x128xf32>
    %52 = vector.extract_strided_slice %43 {offsets = [0, 384], sizes = [1, 128], strides = [1, 1]} : vector<1x512xf32> to vector<1x128xf32>
    %53 = arith.mulf %50, %37 : vector<1x128xf32>
    %54 = arith.mulf %49, %52 : vector<1x128xf32>
    %55 = arith.addf %53, %54 : vector<1x128xf32>
    %56 = math.tanh %55 : vector<1x128xf32>
    %57 = arith.mulf %51, %56 : vector<1x128xf32>
    %58 = vector.extract_strided_slice %8 {offsets = [3, 0], sizes = [1, 512], strides = [1, 1]} : vector<8x512xf32> to vector<1x512xf32>
    %cst_14 = arith.constant dense<0.000000e+00> : vector<1x512xf32>
    %59 = tpu.matmul %57, %1, %cst_14 {dimension_numbers = #tpu.dot_dimension_numbers<[1], [0], [0], [1], [0, 0, 1, 1], [], []>} : vector<1x128xf32>, vector<128x512xf32>, vector<1x512xf32> -> vector<1x512xf32>
    %60 = arith.addf %58, %59 : vector<1x512xf32>
    %61 = math.tanh %60 : vector<1x512xf32>
    %62 = vector.extract_strided_slice %61 {offsets = [0, 0], sizes = [1, 384], strides = [1, 1]} : vector<1x512xf32> to vector<1x384xf32>
    %cst_15 = arith.constant 5.000000e-01 : f32
    %63 = vector.broadcast %cst_15 : f32 to vector<1x384xf32>
    %64 = arith.mulf %63, %62 : vector<1x384xf32>
    %cst_16 = arith.constant 5.000000e-01 : f32
    %65 = vector.broadcast %cst_16 : f32 to vector<1x384xf32>
    %66 = arith.addf %64, %65 : vector<1x384xf32>
    %67 = vector.extract_strided_slice %66 {offsets = [0, 0], sizes = [1, 128], strides = [1, 1]} : vector<1x384xf32> to vector<1x128xf32>
    %68 = vector.extract_strided_slice %66 {offsets = [0, 128], sizes = [1, 128], strides = [1, 1]} : vector<1x384xf32> to vector<1x128xf32>
    %69 = vector.extract_strided_slice %66 {offsets = [0, 256], sizes = [1, 128], strides = [1, 1]} : vector<1x384xf32> to vector<1x128xf32>
    %70 = vector.extract_strided_slice %61 {offsets = [0, 384], sizes = [1, 128], strides = [1, 1]} : vector<1x512xf32> to vector<1x128xf32>
    %71 = arith.mulf %68, %55 : vector<1x128xf32>
    %72 = arith.mulf %67, %70 : vector<1x128xf32>
    %73 = arith.addf %71, %72 : vector<1x128xf32>
    %74 = math.tanh %73 : vector<1x128xf32>
    %75 = arith.mulf %69, %74 : vector<1x128xf32>
    %76 = vector.extract_strided_slice %8 {offsets = [4, 0], sizes = [1, 512], strides = [1, 1]} : vector<8x512xf32> to vector<1x512xf32>
    %cst_17 = arith.constant dense<0.000000e+00> : vector<1x512xf32>
    %77 = tpu.matmul %75, %1, %cst_17 {dimension_numbers = #tpu.dot_dimension_numbers<[1], [0], [0], [1], [0, 0, 1, 1], [], []>} : vector<1x128xf32>, vector<128x512xf32>, vector<1x512xf32> -> vector<1x512xf32>
    %78 = arith.addf %76, %77 : vector<1x512xf32>
    %79 = math.tanh %78 : vector<1x512xf32>
    %80 = vector.extract_strided_slice %79 {offsets = [0, 0], sizes = [1, 384], strides = [1, 1]} : vector<1x512xf32> to vector<1x384xf32>
    %cst_18 = arith.constant 5.000000e-01 : f32
    %81 = vector.broadcast %cst_18 : f32 to vector<1x384xf32>
    %82 = arith.mulf %81, %80 : vector<1x384xf32>
    %cst_19 = arith.constant 5.000000e-01 : f32
    %83 = vector.broadcast %cst_19 : f32 to vector<1x384xf32>
    %84 = arith.addf %82, %83 : vector<1x384xf32>
    %85 = vector.extract_strided_slice %84 {offsets = [0, 0], sizes = [1, 128], strides = [1, 1]} : vector<1x384xf32> to vector<1x128xf32>
    %86 = vector.extract_strided_slice %84 {offsets = [0, 128], sizes = [1, 128], strides = [1, 1]} : vector<1x384xf32> to vector<1x128xf32>
    %87 = vector.extract_strided_slice %84 {offsets = [0, 256], sizes = [1, 128], strides = [1, 1]} : vector<1x384xf32> to vector<1x128xf32>
    %88 = vector.extract_strided_slice %79 {offsets = [0, 384], sizes = [1, 128], strides = [1, 1]} : vector<1x512xf32> to vector<1x128xf32>
    %89 = arith.mulf %86, %73 : vector<1x128xf32>
    %90 = arith.mulf %85, %88 : vector<1x128xf32>
    %91 = arith.addf %89, %90 : vector<1x128xf32>
    %92 = math.tanh %91 : vector<1x128xf32>
    %93 = arith.mulf %87, %92 : vector<1x128xf32>
    %94 = vector.extract_strided_slice %8 {offsets = [5, 0], sizes = [1, 512], strides = [1, 1]} : vector<8x512xf32> to vector<1x512xf32>
    %cst_20 = arith.constant dense<0.000000e+00> : vector<1x512xf32>
    %95 = tpu.matmul %93, %1, %cst_20 {dimension_numbers = #tpu.dot_dimension_numbers<[1], [0], [0], [1], [0, 0, 1, 1], [], []>} : vector<1x128xf32>, vector<128x512xf32>, vector<1x512xf32> -> vector<1x512xf32>
    %96 = arith.addf %94, %95 : vector<1x512xf32>
    %97 = math.tanh %96 : vector<1x512xf32>
    %98 = vector.extract_strided_slice %97 {offsets = [0, 0], sizes = [1, 384], strides = [1, 1]} : vector<1x512xf32> to vector<1x384xf32>
    %cst_21 = arith.constant 5.000000e-01 : f32
    %99 = vector.broadcast %cst_21 : f32 to vector<1x384xf32>
    %100 = arith.mulf %99, %98 : vector<1x384xf32>
    %cst_22 = arith.constant 5.000000e-01 : f32
    %101 = vector.broadcast %cst_22 : f32 to vector<1x384xf32>
    %102 = arith.addf %100, %101 : vector<1x384xf32>
    %103 = vector.extract_strided_slice %102 {offsets = [0, 0], sizes = [1, 128], strides = [1, 1]} : vector<1x384xf32> to vector<1x128xf32>
    %104 = vector.extract_strided_slice %102 {offsets = [0, 128], sizes = [1, 128], strides = [1, 1]} : vector<1x384xf32> to vector<1x128xf32>
    %105 = vector.extract_strided_slice %102 {offsets = [0, 256], sizes = [1, 128], strides = [1, 1]} : vector<1x384xf32> to vector<1x128xf32>
    %106 = vector.extract_strided_slice %97 {offsets = [0, 384], sizes = [1, 128], strides = [1, 1]} : vector<1x512xf32> to vector<1x128xf32>
    %107 = arith.mulf %104, %91 : vector<1x128xf32>
    %108 = arith.mulf %103, %106 : vector<1x128xf32>
    %109 = arith.addf %107, %108 : vector<1x128xf32>
    %110 = math.tanh %109 : vector<1x128xf32>
    %111 = arith.mulf %105, %110 : vector<1x128xf32>
    %112 = vector.extract_strided_slice %8 {offsets = [6, 0], sizes = [1, 512], strides = [1, 1]} : vector<8x512xf32> to vector<1x512xf32>
    %cst_23 = arith.constant dense<0.000000e+00> : vector<1x512xf32>
    %113 = tpu.matmul %111, %1, %cst_23 {dimension_numbers = #tpu.dot_dimension_numbers<[1], [0], [0], [1], [0, 0, 1, 1], [], []>} : vector<1x128xf32>, vector<128x512xf32>, vector<1x512xf32> -> vector<1x512xf32>
    %114 = arith.addf %112, %113 : vector<1x512xf32>
    %115 = math.tanh %114 : vector<1x512xf32>
    %116 = vector.extract_strided_slice %115 {offsets = [0, 0], sizes = [1, 384], strides = [1, 1]} : vector<1x512xf32> to vector<1x384xf32>
    %cst_24 = arith.constant 5.000000e-01 : f32
    %117 = vector.broadcast %cst_24 : f32 to vector<1x384xf32>
    %118 = arith.mulf %117, %116 : vector<1x384xf32>
    %cst_25 = arith.constant 5.000000e-01 : f32
    %119 = vector.broadcast %cst_25 : f32 to vector<1x384xf32>
    %120 = arith.addf %118, %119 : vector<1x384xf32>
    %121 = vector.extract_strided_slice %120 {offsets = [0, 0], sizes = [1, 128], strides = [1, 1]} : vector<1x384xf32> to vector<1x128xf32>
    %122 = vector.extract_strided_slice %120 {offsets = [0, 128], sizes = [1, 128], strides = [1, 1]} : vector<1x384xf32> to vector<1x128xf32>
    %123 = vector.extract_strided_slice %120 {offsets = [0, 256], sizes = [1, 128], strides = [1, 1]} : vector<1x384xf32> to vector<1x128xf32>
    %124 = vector.extract_strided_slice %115 {offsets = [0, 384], sizes = [1, 128], strides = [1, 1]} : vector<1x512xf32> to vector<1x128xf32>
    %125 = arith.mulf %122, %109 : vector<1x128xf32>
    %126 = arith.mulf %121, %124 : vector<1x128xf32>
    %127 = arith.addf %125, %126 : vector<1x128xf32>
    %128 = math.tanh %127 : vector<1x128xf32>
    %129 = arith.mulf %123, %128 : vector<1x128xf32>
    %130 = vector.extract_strided_slice %8 {offsets = [7, 0], sizes = [1, 512], strides = [1, 1]} : vector<8x512xf32> to vector<1x512xf32>
    %cst_26 = arith.constant dense<0.000000e+00> : vector<1x512xf32>
    %131 = tpu.matmul %129, %1, %cst_26 {dimension_numbers = #tpu.dot_dimension_numbers<[1], [0], [0], [1], [0, 0, 1, 1], [], []>} : vector<1x128xf32>, vector<128x512xf32>, vector<1x512xf32> -> vector<1x512xf32>
    %132 = arith.addf %130, %131 : vector<1x512xf32>
    %133 = math.tanh %132 : vector<1x512xf32>
    %134 = vector.extract_strided_slice %133 {offsets = [0, 0], sizes = [1, 384], strides = [1, 1]} : vector<1x512xf32> to vector<1x384xf32>
    %cst_27 = arith.constant 5.000000e-01 : f32
    %135 = vector.broadcast %cst_27 : f32 to vector<1x384xf32>
    %136 = arith.mulf %135, %134 : vector<1x384xf32>
    %cst_28 = arith.constant 5.000000e-01 : f32
    %137 = vector.broadcast %cst_28 : f32 to vector<1x384xf32>
    %138 = arith.addf %136, %137 : vector<1x384xf32>
    %139 = vector.extract_strided_slice %138 {offsets = [0, 0], sizes = [1, 128], strides = [1, 1]} : vector<1x384xf32> to vector<1x128xf32>
    %140 = vector.extract_strided_slice %138 {offsets = [0, 128], sizes = [1, 128], strides = [1, 1]} : vector<1x384xf32> to vector<1x128xf32>
    %141 = vector.extract_strided_slice %138 {offsets = [0, 256], sizes = [1, 128], strides = [1, 1]} : vector<1x384xf32> to vector<1x128xf32>
    %142 = vector.extract_strided_slice %133 {offsets = [0, 384], sizes = [1, 128], strides = [1, 1]} : vector<1x512xf32> to vector<1x128xf32>
    %143 = arith.mulf %140, %127 : vector<1x128xf32>
    %144 = arith.mulf %139, %142 : vector<1x128xf32>
    %145 = arith.addf %143, %144 : vector<1x128xf32>
    %146 = math.tanh %145 : vector<1x128xf32>
    %147 = arith.mulf %141, %146 : vector<1x128xf32>
    %c0_29 = arith.constant 0 : index
    %c0_30 = arith.constant 0 : index
    %148 = vector.load %arg4[%c0_29, %c0_30] : memref<1x128xf32, #tpu.memory_space<vmem>>, vector<1x128xf32>
    %149 = arith.mulf %147, %148 : vector<1x128xf32>
    %cst_31 = arith.constant dense<0.000000e+00> : vector<1xf32>
    %150 = vector.multi_reduction <add>, %149, %cst_31 [1] : vector<1x128xf32> to vector<1xf32>
    %151 = vector.shape_cast %150 : vector<1xf32> to vector<1x1xf32>
    %c0_32 = arith.constant 0 : index
    %c0_33 = arith.constant 0 : index
    %152 = vector.load %arg5[%c0_32, %c0_33] : memref<1x1xf32, #tpu.memory_space<vmem>>, vector<1x1xf32>
    %153 = arith.addf %151, %152 : vector<1x1xf32>
    %c0_34 = arith.constant 0 : index
    %c0_35 = arith.constant 0 : index
    %154 = vector.load %arg6[%c0_34, %c0_35] : memref<1x1xf32, #tpu.memory_space<vmem>>, vector<1x1xf32>
    tpu.vector_store %arg6[%c0_34, %c0_35], %153 {strides = array<i32>} : memref<1x1xf32, #tpu.memory_space<vmem>>, vector<1x1xf32>,
    return
  }
}

</mosaic_0001>

<llo_original>
// kernel: lstm_model_forward.1
$region0: #{lstm_model_forward.1}
  #allocation0 [shape = 'u32[]', space=smem, size = 0x4, offset = 0x4, fixed_abs, tag = 'smem constant byte address 0x4 - core index']
  #allocation1 [shape = 'u32[72,128]{1,0:T(1,128)}', space=vmem, size = 0x9000, scoped, tag = 'internal scratch']
  #allocation2 [shape = 'f32[1,1]{1,0:T(1,128)S(1)}', space=vmem, size = 0x200, scoped, tag = 'scoped memory for lstm_model_forward.1']
  %s0 = inlined_call_operand.vmem [shape: f32[8,1], index: 0, kind: input, shape index: {}]
  %s1 = inlined_call_operand.vmem [shape: f32[1,512], index: 1, kind: input, shape index: {}]
  %s2 = inlined_call_operand.hbm [shape: f32[128,512], index: 2, kind: input, shape index: {}]
  %s3 = inlined_call_operand.vmem [shape: f32[1,512], index: 3, kind: input, shape index: {}]
  %s4 = inlined_call_operand.vmem [shape: f32[1,128], index: 4, kind: input, shape index: {}]
  %s5 = inlined_call_operand.<no memory space> [shape: f32[1,1], index: 5, kind: input, shape index: {}]
  %s6 = inlined_call_operand.hbm [shape: f32[1,1], index: 6, kind: output, shape index: {}]
  %s7 = sld [smem:[#allocation0]]
  $region38: #{lstm_model_forward.1} parent=0
    _
  %s9 = ssub.s32 1, %s7
  %s10 = scalar_select 0, %s9, %s7
  %v11 = vstv %s5
  %12 = vst [vmem:[#allocation2] sm:$0x1] %v11
  $region1: #{lstm_model_forward.1} parent=0
    #allocation3 [shape = 'u8[262144]{0}', space=vmem, size = 0x40000, scoped, tag = 'input window, operand 2, single buffered']
    #allocation4 [shape = 's32[1]{0}', space=sflag, size = 0x4, scoped, tag = 'scoped memory for lstm_model_forward.1']
    #allocation5 [shape = 's32[1]{0}', space=sflag, size = 0x4, scoped, tag = 'scoped memory for lstm_model_forward.1']
    #allocation6 [shape = 'u8[512]{0}', space=vmem, size = 0x400, scoped, tag = 'output window, operand 0, single buffered']
    %13 = vsyncpa [#allocation4], 0
    %14 = vsyncpa [#allocation5], 0
    // Predicated region
    $region2: #{lstm_model_forward.1} parent=1 // pred_check
      _
    $region3: #{lstm_model_forward.1} parent=1 // pred_check_branch
      %16 = sbr.rel (0) target = $region5
    $region4: #{lstm_model_forward.1} parent=1 // pred_region
      _
    $region5: #{lstm_model_forward.1} parent=1 // pred_fallthru
      _
    // Predicated region
    $region6: #{lstm_model_forward.1} parent=1 // pred_check
      _
    $region7: #{lstm_model_forward.1} parent=1 // pred_check_branch
      %18 = sbr.rel (0) target = $region9
    $region8: #{lstm_model_forward.1} parent=1 // pred_region
      _
    $region9: #{lstm_model_forward.1} parent=1 // pred_fallthru
      _
    // Predicated region
    $region10: #{lstm_model_forward.1} parent=1 // pred_check
      _
    $region11: #{lstm_model_forward.1} parent=1 // pred_check_branch
      %20 = sbr.rel (0) target = $region13
    $region12: #{lstm_model_forward.1} parent=1 // pred_region
      %22 = vsyncadd [#allocation4], 0
      %s23 = sshll.u32 %s2, 4
      %s24 = int_to_ptr.hbm [resolvable:$true] %s23
      %s25 = sshll.u32 [#allocation3], 4
      %s26 = int_to_ptr.vmem [resolvable:$true] %s25
      %31 = dma.hbm_to_vmem [thread:$0]  %s24, 8192, %s26, [#allocation4], 512, 512, 32
    $region13: #{lstm_model_forward.1} parent=1 // pred_fallthru
      _
    // Predicated region
    $region14: #{lstm_model_forward.1} parent=1 // pred_check
      _
    $region15: #{lstm_model_forward.1} parent=1 // pred_check_branch
      %33 = sbr.rel (0) target = $region17
    $region16: #{lstm_model_forward.1} parent=1 // pred_region
      _
    $region17: #{lstm_model_forward.1} parent=1 // pred_fallthru
      _
    // Predicated region
    $region18: #{lstm_model_forward.1} parent=1 // pred_check
      _
    $region19: #{lstm_model_forward.1} parent=1 // pred_check_branch
      %35 = sbr.rel (0) target = $region21
    $region20: #{lstm_model_forward.1} parent=1 // pred_region
      _
    $region21: #{lstm_model_forward.1} parent=1 // pred_fallthru
      _
    // Predicated region
    $region22: #{lstm_model_forward.1} parent=1 // pred_check
      _
    $region23: #{lstm_model_forward.1} parent=1 // pred_check_branch
      %37 = sbr.rel (0) target = $region25
    $region24: #{lstm_model_forward.1} parent=1 // pred_region
      _
    $region25: #{lstm_model_forward.1} parent=1 // pred_fallthru
      _
    // Predicated region
    $region26: #{lstm_model_forward.1} parent=1 // pred_check
      _
    $region27: #{lstm_model_forward.1} parent=1 // pred_check_branch
      %39 = sbr.rel (0) target = $region29
    $region28: #{lstm_model_forward.1} parent=1 // pred_region
      %41 = dma.done [#allocation4], 8192
    $region29: #{lstm_model_forward.1} parent=1 // pred_fallthru
      _
    %v42 = vld [vmem:[%s1] sm:$0xf]
    %v43 = vld [vmem:[#allocation3] sm:$0xff]
    %v44 = vld [vmem:[#allocation3 + $0x8] sm:$0xff]
    %v45 = vld [vmem:[#allocation3 + $0x10] sm:$0xff]
    %v46 = vld [vmem:[#allocation3 + $0x18] sm:$0xff]
    %v47 = vld [vmem:[#allocation3 + $0x20] sm:$0xff]
    %v48 = vld [vmem:[#allocation3 + $0x28] sm:$0xff]
    %v49 = vld [vmem:[#allocation3 + $0x30] sm:$0xff]
    %v50 = vld [vmem:[#allocation3 + $0x38] sm:$0xff]
    %v51 = vld [vmem:[#allocation3 + $0x40] sm:$0xff]
    %v52 = vld [vmem:[#allocation3 + $0x48] sm:$0xff]
    %v53 = vld [vmem:[#allocation3 + $0x50] sm:$0xff]
    %v54 = vld [vmem:[#allocation3 + $0x58] sm:$0xff]
    %v55 = vld [vmem:[#allocation3 + $0x60] sm:$0xff]
    %v56 = vld [vmem:[#allocation3 + $0x68] sm:$0xff]
    %v57 = vld [vmem:[#allocation3 + $0x70] sm:$0xff]
    %v58 = vld [vmem:[#allocation3 + $0x78] sm:$0xff]
    %v59 = vld [vmem:[#allocation3 + $0x80] sm:$0xff]
    %v60 = vld [vmem:[#allocation3 + $0x88] sm:$0xff]
    %v61 = vld [vmem:[#allocation3 + $0x90] sm:$0xff]
    %v62 = vld [vmem:[#allocation3 + $0x98] sm:$0xff]
    %v63 = vld [vmem:[#allocation3 + $0xa0] sm:$0xff]
    %v64 = vld [vmem:[#allocation3 + $0xa8] sm:$0xff]
    %v65 = vld [vmem:[#allocation3 + $0xb0] sm:$0xff]
    %v66 = vld [vmem:[#allocation3 + $0xb8] sm:$0xff]
    %v67 = vld [vmem:[#allocation3 + $0xc0] sm:$0xff]
    %v68 = vld [vmem:[#allocation3 + $0xc8] sm:$0xff]
    %v69 = vld [vmem:[#allocation3 + $0xd0] sm:$0xff]
    %v70 = vld [vmem:[#allocation3 + $0xd8] sm:$0xff]
    %v71 = vld [vmem:[#allocation3 + $0xe0] sm:$0xff]
    %v72 = vld [vmem:[#allocation3 + $0xe8] sm:$0xff]
    %v73 = vld [vmem:[#allocation3 + $0xf0] sm:$0xff]
    %v74 = vld [vmem:[#allocation3 + $0xf8] sm:$0xff]
    %v75 = vld [vmem:[#allocation3 + $0x100] sm:$0xff]
    %v76 = vld [vmem:[#allocation3 + $0x108] sm:$0xff]
    %v77 = vld [vmem:[#allocation3 + $0x110] sm:$0xff]
    %v78 = vld [vmem:[#allocation3 + $0x118] sm:$0xff]
    %v79 = vld [vmem:[#allocation3 + $0x120] sm:$0xff]
    %v80 = vld [vmem:[#allocation3 + $0x128] sm:$0xff]
    %v81 = vld [vmem:[#allocation3 + $0x130] sm:$0xff]
    %v82 = vld [vmem:[#allocation3 + $0x138] sm:$0xff]
    %v83 = vld [vmem:[#allocation3 + $0x140] sm:$0xff]
    %v84 = vld [vmem:[#allocation3 + $0x148] sm:$0xff]
    %v85 = vld [vmem:[#allocation3 + $0x150] sm:$0xff]
    %v86 = vld [vmem:[#allocation3 + $0x158] sm:$0xff]
    %v87 = vld [vmem:[#allocation3 + $0x160] sm:$0xff]
    %v88 = vld [vmem:[#allocation3 + $0x168] sm:$0xff]
    %v89 = vld [vmem:[#allocation3 + $0x170] sm:$0xff]
    %v90 = vld [vmem:[#allocation3 + $0x178] sm:$0xff]
    %v91 = vld [vmem:[#allocation3 + $0x180] sm:$0xff]
    %v92 = vld [vmem:[#allocation3 + $0x188] sm:$0xff]
    %v93 = vld [vmem:[#allocation3 + $0x190] sm:$0xff]
    %v94 = vld [vmem:[#allocation3 + $0x198] sm:$0xff]
    %v95 = vld [vmem:[#allocation3 + $0x1a0] sm:$0xff]
    %v96 = vld [vmem:[#allocation3 + $0x1a8] sm:$0xff]
    %v97 = vld [vmem:[#allocation3 + $0x1b0] sm:$0xff]
    %v98 = vld [vmem:[#allocation3 + $0x1b8] sm:$0xff]
    %v99 = vld [vmem:[#allocation3 + $0x1c0] sm:$0xff]
    %v100 = vld [vmem:[#allocation3 + $0x1c8] sm:$0xff]
    %v101 = vld [vmem:[#allocation3 + $0x1d0] sm:$0xff]
    %v102 = vld [vmem:[#allocation3 + $0x1d8] sm:$0xff]
    %v103 = vld [vmem:[#allocation3 + $0x1e0] sm:$0xff]
    %v104 = vld [vmem:[#allocation3 + $0x1e8] sm:$0xff]
    %v105 = vld [vmem:[#allocation3 + $0x1f0] sm:$0xff]
    %v106 = vld [vmem:[#allocation3 + $0x1f8] sm:$0xff]
    %v107 = vld [vmem:[%s3] sm:$0xf]
    %v108 = vld [vmem:[%s0] sm:$0xff]
    %110 = vset.pattern.permute.xlu0 0
    %111 = vperm.xlu0 %110, %v108
    %v112 = vpop.permute.xlu0 %111
    %v115 = vperm.slane %v42, 0
    %v116 = vperm.slane %v42, 1
    %v117 = vperm.slane %v42, 2
    %v118 = vperm.slane %v42, 3
    %v123 = vmul.f32 %v112, %v115
    %v124 = vmul.f32 %v112, %v116
    %v125 = vmul.f32 %v112, %v117
    %v126 = vmul.f32 %v112, %v118
    %v128 = vperm.slane %v107, 0
    %v129 = vperm.slane %v107, 1
    %v130 = vperm.slane %v107, 2
    %v131 = vperm.slane %v107, 3
    %v136 = vadd.f32 %v123, %v128
    %v137 = vadd.f32 %v124, %v129
    %v138 = vadd.f32 %v125, %v130
    %v139 = vadd.f32 %v126, %v131
    %v140 = vtanh.pop %v136
    %v141 = vtanh.pop %v138
    %v142 = vtanh.pop %v139
    %v143 = vmul.f32 %v140, 0.5
    %v144 = vmul.f32 %v141, 0.5
    %v145 = vadd.f32 %v143, 0.5
    %v146 = vadd.f32 %v144, 0.5
    %v147 = vmul.f32 %v145, %v142
    %v148 = vtanh.pop %v147
    %v149 = vmul.f32 %v146, %v148
    %150 = vmatpush.msra.mxu0 %v103
    %151 = vmatpush.msra.mxu0 %v99
    %152 = vmatpush.msra.mxu0 %v95
    %153 = vmatpush.msra.mxu0 %v91
    %154 = vmatpush.msra.mxu0 %v87
    %155 = vmatpush.msra.mxu0 %v83
    %156 = vmatpush.msra.mxu0 %v79
    %157 = vmatpush.msra.mxu0 %v75
    %158 = vmatpush.msra.mxu0 %v71
    %159 = vmatpush.msra.mxu0 %v67
    %160 = vmatpush.msra.mxu0 %v63
    %161 = vmatpush.msra.mxu0 %v59
    %162 = vmatpush.msra.mxu0 %v55
    %163 = vmatpush.msra.mxu0 %v51
    %164 = vmatpush.msra.mxu0 %v47
    %165 = vmatpush.msra.mxu0 %v43
    %166 = vmatmul.f32.gmra.mxu0 %v149
    %v167 = vpop.f32.mrf.mxu0
    %v168 = vadd.f32 0.0, %v167
    %169 = vdwg.mxu0
    %170 = vmatpush.msra.mxu0 %v104
    %171 = vmatpush.msra.mxu0 %v100
    %172 = vmatpush.msra.mxu0 %v96
    %173 = vmatpush.msra.mxu0 %v92
    %174 = vmatpush.msra.mxu0 %v88
    %175 = vmatpush.msra.mxu0 %v84
    %176 = vmatpush.msra.mxu0 %v80
    %177 = vmatpush.msra.mxu0 %v76
    %178 = vmatpush.msra.mxu0 %v72
    %179 = vmatpush.msra.mxu0 %v68
    %180 = vmatpush.msra.mxu0 %v64
    %181 = vmatpush.msra.mxu0 %v60
    %182 = vmatpush.msra.mxu0 %v56
    %183 = vmatpush.msra.mxu0 %v52
    %184 = vmatpush.msra.mxu0 %v48
    %185 = vmatpush.msra.mxu0 %v44
    %186 = vmatmul.f32.gmra.mxu0 %v149
    %v187 = vpop.f32.mrf.mxu0
    %v188 = vadd.f32 0.0, %v187
    %189 = vdwg.mxu0
    %190 = vmatpush.msra.mxu0 %v105
    %191 = vmatpush.msra.mxu0 %v101
    %192 = vmatpush.msra.mxu0 %v97
    %193 = vmatpush.msra.mxu0 %v93
    %194 = vmatpush.msra.mxu0 %v89
    %195 = vmatpush.msra.mxu0 %v85
    %196 = vmatpush.msra.mxu0 %v81
    %197 = vmatpush.msra.mxu0 %v77
    %198 = vmatpush.msra.mxu0 %v73
    %199 = vmatpush.msra.mxu0 %v69
    %200 = vmatpush.msra.mxu0 %v65
    %201 = vmatpush.msra.mxu0 %v61
    %202 = vmatpush.msra.mxu0 %v57
    %203 = vmatpush.msra.mxu0 %v53
    %204 = vmatpush.msra.mxu0 %v49
    %205 = vmatpush.msra.mxu0 %v45
    %206 = vmatmul.f32.gmra.mxu0 %v149
    %v207 = vpop.f32.mrf.mxu0
    %v208 = vadd.f32 0.0, %v207
    %209 = vdwg.mxu0
    %210 = vmatpush.msra.mxu0 %v106
    %211 = vmatpush.msra.mxu0 %v102
    %212 = vmatpush.msra.mxu0 %v98
    %213 = vmatpush.msra.mxu0 %v94
    %214 = vmatpush.msra.mxu0 %v90
    %215 = vmatpush.msra.mxu0 %v86
    %216 = vmatpush.msra.mxu0 %v82
    %217 = vmatpush.msra.mxu0 %v78
    %218 = vmatpush.msra.mxu0 %v74
    %219 = vmatpush.msra.mxu0 %v70
    %220 = vmatpush.msra.mxu0 %v66
    %221 = vmatpush.msra.mxu0 %v62
    %222 = vmatpush.msra.mxu0 %v58
    %223 = vmatpush.msra.mxu0 %v54
    %224 = vmatpush.msra.mxu0 %v50
    %225 = vmatpush.msra.mxu0 %v46
    %226 = vmatmul.f32.gmra.mxu0 %v149
    %v227 = vpop.f32.mrf.mxu0
    %v228 = vadd.f32 0.0, %v227
    %229 = vdwg.mxu0
    %v234 = vrot.slane %v168, 7
    %v235 = vrot.slane %v188, 7
    %v236 = vrot.slane %v208, 7
    %v237 = vrot.slane %v228, 7
    %v242 = vadd.f32 %v136, %v234
    %v243 = vadd.f32 %v137, %v235
    %v244 = vadd.f32 %v138, %v236
    %v245 = vadd.f32 %v139, %v237
    %v246 = vtanh.pop %v242
    %v247 = vtanh.pop %v243
    %v248 = vtanh.pop %v244
    %v249 = vtanh.pop %v245
    %v250 = vmul.f32 %v246, 0.5
    %v251 = vmul.f32 %v247, 0.5
    %v252 = vmul.f32 %v248, 0.5
    %v253 = vadd.f32 %v250, 0.5
    %v254 = vadd.f32 %v251, 0.5
    %v255 = vadd.f32 %v252, 0.5
    %v257 = vrot.slane %v147, 7
    %v259 = vmul.f32 %v254, %v257
    %v260 = vmul.f32 %v253, %v249
    %v261 = vadd.f32 %v259, %v260
    %v262 = vtanh.pop %v261
    %v263 = vmul.f32 %v255, %v262
    %v265 = vrot.slane %v263, 1
    %267 = vmatpush.msra.mxu0 %v103
    %268 = vmatpush.msra.mxu0 %v99
    %269 = vmatpush.msra.mxu0 %v95
    %270 = vmatpush.msra.mxu0 %v91
    %271 = vmatpush.msra.mxu0 %v87
    %272 = vmatpush.msra.mxu0 %v83
    %273 = vmatpush.msra.mxu0 %v79
    %274 = vmatpush.msra.mxu0 %v75
    %275 = vmatpush.msra.mxu0 %v71
    %276 = vmatpush.msra.mxu0 %v67
    %277 = vmatpush.msra.mxu0 %v63
    %278 = vmatpush.msra.mxu0 %v59
    %279 = vmatpush.msra.mxu0 %v55
    %280 = vmatpush.msra.mxu0 %v51
    %281 = vmatpush.msra.mxu0 %v47
    %282 = vmatpush.msra.mxu0 %v43
    %283 = vmatmul.f32.gmra.mxu0 %v265
    %v284 = vpop.f32.mrf.mxu0
    %v285 = vadd.f32 0.0, %v284
    %286 = vdwg.mxu0
    %287 = vmatpush.msra.mxu0 %v104
    %288 = vmatpush.msra.mxu0 %v100
    %289 = vmatpush.msra.mxu0 %v96
    %290 = vmatpush.msra.mxu0 %v92
    %291 = vmatpush.msra.mxu0 %v88
    %292 = vmatpush.msra.mxu0 %v84
    %293 = vmatpush.msra.mxu0 %v80
    %294 = vmatpush.msra.mxu0 %v76
    %295 = vmatpush.msra.mxu0 %v72
    %296 = vmatpush.msra.mxu0 %v68
    %297 = vmatpush.msra.mxu0 %v64
    %298 = vmatpush.msra.mxu0 %v60
    %299 = vmatpush.msra.mxu0 %v56
    %300 = vmatpush.msra.mxu0 %v52
    %301 = vmatpush.msra.mxu0 %v48
    %302 = vmatpush.msra.mxu0 %v44
    %303 = vmatmul.f32.gmra.mxu0 %v265
    %v304 = vpop.f32.mrf.mxu0
    %v305 = vadd.f32 0.0, %v304
    %306 = vdwg.mxu0
    %307 = vmatpush.msra.mxu0 %v105
    %308 = vmatpush.msra.mxu0 %v101
    %309 = vmatpush.msra.mxu0 %v97
    %310 = vmatpush.msra.mxu0 %v93
    %311 = vmatpush.msra.mxu0 %v89
    %312 = vmatpush.msra.mxu0 %v85
    %313 = vmatpush.msra.mxu0 %v81
    %314 = vmatpush.msra.mxu0 %v77
    %315 = vmatpush.msra.mxu0 %v73
    %316 = vmatpush.msra.mxu0 %v69
    %317 = vmatpush.msra.mxu0 %v65
    %318 = vmatpush.msra.mxu0 %v61
    %319 = vmatpush.msra.mxu0 %v57
    %320 = vmatpush.msra.mxu0 %v53
    %321 = vmatpush.msra.mxu0 %v49
    %322 = vmatpush.msra.mxu0 %v45
    %323 = vmatmul.f32.gmra.mxu0 %v265
    %v324 = vpop.f32.mrf.mxu0
    %v325 = vadd.f32 0.0, %v324
    %326 = vdwg.mxu0
    %327 = vmatpush.msra.mxu0 %v106
    %328 = vmatpush.msra.mxu0 %v102
    %329 = vmatpush.msra.mxu0 %v98
    %330 = vmatpush.msra.mxu0 %v94
    %331 = vmatpush.msra.mxu0 %v90
    %332 = vmatpush.msra.mxu0 %v86
    %333 = vmatpush.msra.mxu0 %v82
    %334 = vmatpush.msra.mxu0 %v78
    %335 = vmatpush.msra.mxu0 %v74
    %336 = vmatpush.msra.mxu0 %v70
    %337 = vmatpush.msra.mxu0 %v66
    %338 = vmatpush.msra.mxu0 %v62
    %339 = vmatpush.msra.mxu0 %v58
    %340 = vmatpush.msra.mxu0 %v54
    %341 = vmatpush.msra.mxu0 %v50
    %342 = vmatpush.msra.mxu0 %v46
    %343 = vmatmul.f32.gmra.mxu0 %v265
    %v344 = vpop.f32.mrf.mxu0
    %v345 = vadd.f32 0.0, %v344
    %346 = vdwg.mxu0
    %v351 = vrot.slane %v285, 6
    %v352 = vrot.slane %v305, 6
    %v353 = vrot.slane %v325, 6
    %v354 = vrot.slane %v345, 6
    %v359 = vadd.f32 %v136, %v351
    %v360 = vadd.f32 %v137, %v352
    %v361 = vadd.f32 %v138, %v353
    %v362 = vadd.f32 %v139, %v354
    %v363 = vtanh.pop %v359
    %v364 = vtanh.pop %v360
    %v365 = vtanh.pop %v361
    %v366 = vtanh.pop %v362
    %v367 = vmul.f32 %v363, 0.5
    %v368 = vmul.f32 %v364, 0.5
    %v369 = vmul.f32 %v365, 0.5
    %v370 = vadd.f32 %v367, 0.5
    %v371 = vadd.f32 %v368, 0.5
    %v372 = vadd.f32 %v369, 0.5
    %v374 = vrot.slane %v261, 7
    %v376 = vmul.f32 %v371, %v374
    %v377 = vmul.f32 %v370, %v366
    %v378 = vadd.f32 %v376, %v377
    %v379 = vtanh.pop %v378
    %v380 = vmul.f32 %v372, %v379
    %v382 = vrot.slane %v380, 2
    %384 = vmatpush.msra.mxu0 %v103
    %385 = vmatpush.msra.mxu0 %v99
    %386 = vmatpush.msra.mxu0 %v95
    %387 = vmatpush.msra.mxu0 %v91
    %388 = vmatpush.msra.mxu0 %v87
    %389 = vmatpush.msra.mxu0 %v83
    %390 = vmatpush.msra.mxu0 %v79
    %391 = vmatpush.msra.mxu0 %v75
    %392 = vmatpush.msra.mxu0 %v71
    %393 = vmatpush.msra.mxu0 %v67
    %394 = vmatpush.msra.mxu0 %v63
    %395 = vmatpush.msra.mxu0 %v59
    %396 = vmatpush.msra.mxu0 %v55
    %397 = vmatpush.msra.mxu0 %v51
    %398 = vmatpush.msra.mxu0 %v47
    %399 = vmatpush.msra.mxu0 %v43
    %400 = vmatmul.f32.gmra.mxu0 %v382
    %v401 = vpop.f32.mrf.mxu0
    %v402 = vadd.f32 0.0, %v401
    %403 = vdwg.mxu0
    %404 = vmatpush.msra.mxu0 %v104
    %405 = vmatpush.msra.mxu0 %v100
    %406 = vmatpush.msra.mxu0 %v96
    %407 = vmatpush.msra.mxu0 %v92
    %408 = vmatpush.msra.mxu0 %v88
    %409 = vmatpush.msra.mxu0 %v84
    %410 = vmatpush.msra.mxu0 %v80
    %411 = vmatpush.msra.mxu0 %v76
    %412 = vmatpush.msra.mxu0 %v72
    %413 = vmatpush.msra.mxu0 %v68
    %414 = vmatpush.msra.mxu0 %v64
    %415 = vmatpush.msra.mxu0 %v60
    %416 = vmatpush.msra.mxu0 %v56
    %417 = vmatpush.msra.mxu0 %v52
    %418 = vmatpush.msra.mxu0 %v48
    %419 = vmatpush.msra.mxu0 %v44
    %420 = vmatmul.f32.gmra.mxu0 %v382
    %v421 = vpop.f32.mrf.mxu0
    %v422 = vadd.f32 0.0, %v421
    %423 = vdwg.mxu0
    %424 = vmatpush.msra.mxu0 %v105
    %425 = vmatpush.msra.mxu0 %v101
    %426 = vmatpush.msra.mxu0 %v97
    %427 = vmatpush.msra.mxu0 %v93
    %428 = vmatpush.msra.mxu0 %v89
    %429 = vmatpush.msra.mxu0 %v85
    %430 = vmatpush.msra.mxu0 %v81
    %431 = vmatpush.msra.mxu0 %v77
    %432 = vmatpush.msra.mxu0 %v73
    %433 = vmatpush.msra.mxu0 %v69
    %434 = vmatpush.msra.mxu0 %v65
    %435 = vmatpush.msra.mxu0 %v61
    %436 = vmatpush.msra.mxu0 %v57
    %437 = vmatpush.msra.mxu0 %v53
    %438 = vmatpush.msra.mxu0 %v49
    %439 = vmatpush.msra.mxu0 %v45
    %440 = vmatmul.f32.gmra.mxu0 %v382
    %v441 = vpop.f32.mrf.mxu0
    %v442 = vadd.f32 0.0, %v441
    %443 = vdwg.mxu0
    %444 = vmatpush.msra.mxu0 %v106
    %445 = vmatpush.msra.mxu0 %v102
    %446 = vmatpush.msra.mxu0 %v98
    %447 = vmatpush.msra.mxu0 %v94
    %448 = vmatpush.msra.mxu0 %v90
    %449 = vmatpush.msra.mxu0 %v86
    %450 = vmatpush.msra.mxu0 %v82
    %451 = vmatpush.msra.mxu0 %v78
    %452 = vmatpush.msra.mxu0 %v74
    %453 = vmatpush.msra.mxu0 %v70
    %454 = vmatpush.msra.mxu0 %v66
    %455 = vmatpush.msra.mxu0 %v62
    %456 = vmatpush.msra.mxu0 %v58
    %457 = vmatpush.msra.mxu0 %v54
    %458 = vmatpush.msra.mxu0 %v50
    %459 = vmatpush.msra.mxu0 %v46
    %460 = vmatmul.f32.gmra.mxu0 %v382
    %v461 = vpop.f32.mrf.mxu0
    %v462 = vadd.f32 0.0, %v461
    %463 = vdwg.mxu0
    %v468 = vrot.slane %v402, 5
    %v469 = vrot.slane %v422, 5
    %v470 = vrot.slane %v442, 5
    %v471 = vrot.slane %v462, 5
    %v476 = vadd.f32 %v136, %v468
    %v477 = vadd.f32 %v137, %v469
    %v478 = vadd.f32 %v138, %v470
    %v479 = vadd.f32 %v139, %v471
    %v480 = vtanh.pop %v476
    %v481 = vtanh.pop %v477
    %v482 = vtanh.pop %v478
    %v483 = vtanh.pop %v479
    %v484 = vmul.f32 %v480, 0.5
    %v485 = vmul.f32 %v481, 0.5
    %v486 = vmul.f32 %v482, 0.5
    %v487 = vadd.f32 %v484, 0.5
    %v488 = vadd.f32 %v485, 0.5
    %v489 = vadd.f32 %v486, 0.5
    %v491 = vrot.slane %v378, 7
    %v493 = vmul.f32 %v488, %v491
    %v494 = vmul.f32 %v487, %v483
    %v495 = vadd.f32 %v493, %v494
    %v496 = vtanh.pop %v495
    %v497 = vmul.f32 %v489, %v496
    %v499 = vrot.slane %v497, 3
    %501 = vmatpush.msra.mxu0 %v103
    %502 = vmatpush.msra.mxu0 %v99
    %503 = vmatpush.msra.mxu0 %v95
    %504 = vmatpush.msra.mxu0 %v91
    %505 = vmatpush.msra.mxu0 %v87
    %506 = vmatpush.msra.mxu0 %v83
    %507 = vmatpush.msra.mxu0 %v79
    %508 = vmatpush.msra.mxu0 %v75
    %509 = vmatpush.msra.mxu0 %v71
    %510 = vmatpush.msra.mxu0 %v67
    %511 = vmatpush.msra.mxu0 %v63
    %512 = vmatpush.msra.mxu0 %v59
    %513 = vmatpush.msra.mxu0 %v55
    %514 = vmatpush.msra.mxu0 %v51
    %515 = vmatpush.msra.mxu0 %v47
    %516 = vmatpush.msra.mxu0 %v43
    %517 = vmatmul.f32.gmra.mxu0 %v499
    %v518 = vpop.f32.mrf.mxu0
    %v519 = vadd.f32 0.0, %v518
    %520 = vdwg.mxu0
    %521 = vmatpush.msra.mxu0 %v104
    %522 = vmatpush.msra.mxu0 %v100
    %523 = vmatpush.msra.mxu0 %v96
    %524 = vmatpush.msra.mxu0 %v92
    %525 = vmatpush.msra.mxu0 %v88
    %526 = vmatpush.msra.mxu0 %v84
    %527 = vmatpush.msra.mxu0 %v80
    %528 = vmatpush.msra.mxu0 %v76
    %529 = vmatpush.msra.mxu0 %v72
    %530 = vmatpush.msra.mxu0 %v68
    %531 = vmatpush.msra.mxu0 %v64
    %532 = vmatpush.msra.mxu0 %v60
    %533 = vmatpush.msra.mxu0 %v56
    %534 = vmatpush.msra.mxu0 %v52
    %535 = vmatpush.msra.mxu0 %v48
    %536 = vmatpush.msra.mxu0 %v44
    %537 = vmatmul.f32.gmra.mxu0 %v499
    %v538 = vpop.f32.mrf.mxu0
    %v539 = vadd.f32 0.0, %v538
    %540 = vdwg.mxu0
    %541 = vmatpush.msra.mxu0 %v105
    %542 = vmatpush.msra.mxu0 %v101
    %543 = vmatpush.msra.mxu0 %v97
    %544 = vmatpush.msra.mxu0 %v93
    %545 = vmatpush.msra.mxu0 %v89
    %546 = vmatpush.msra.mxu0 %v85
    %547 = vmatpush.msra.mxu0 %v81
    %548 = vmatpush.msra.mxu0 %v77
    %549 = vmatpush.msra.mxu0 %v73
    %550 = vmatpush.msra.mxu0 %v69
    %551 = vmatpush.msra.mxu0 %v65
    %552 = vmatpush.msra.mxu0 %v61
    %553 = vmatpush.msra.mxu0 %v57
    %554 = vmatpush.msra.mxu0 %v53
    %555 = vmatpush.msra.mxu0 %v49
    %556 = vmatpush.msra.mxu0 %v45
    %557 = vmatmul.f32.gmra.mxu0 %v499
    %v558 = vpop.f32.mrf.mxu0
    %v559 = vadd.f32 0.0, %v558
    %560 = vdwg.mxu0
    %561 = vmatpush.msra.mxu0 %v106
    %562 = vmatpush.msra.mxu0 %v102
    %563 = vmatpush.msra.mxu0 %v98
    %564 = vmatpush.msra.mxu0 %v94
    %565 = vmatpush.msra.mxu0 %v90
    %566 = vmatpush.msra.mxu0 %v86
    %567 = vmatpush.msra.mxu0 %v82
    %568 = vmatpush.msra.mxu0 %v78
    %569 = vmatpush.msra.mxu0 %v74
    %570 = vmatpush.msra.mxu0 %v70
    %571 = vmatpush.msra.mxu0 %v66
    %572 = vmatpush.msra.mxu0 %v62
    %573 = vmatpush.msra.mxu0 %v58
    %574 = vmatpush.msra.mxu0 %v54
    %575 = vmatpush.msra.mxu0 %v50
    %576 = vmatpush.msra.mxu0 %v46
    %577 = vmatmul.f32.gmra.mxu0 %v499
    %v578 = vpop.f32.mrf.mxu0
    %v579 = vadd.f32 0.0, %v578
    %580 = vdwg.mxu0
    %v585 = vrot.slane %v519, 4
    %v586 = vrot.slane %v539, 4
    %v587 = vrot.slane %v559, 4
    %v588 = vrot.slane %v579, 4
    %v593 = vadd.f32 %v136, %v585
    %v594 = vadd.f32 %v137, %v586
    %v595 = vadd.f32 %v138, %v587
    %v596 = vadd.f32 %v139, %v588
    %v597 = vtanh.pop %v593
    %v598 = vtanh.pop %v594
    %v599 = vtanh.pop %v595
    %v600 = vtanh.pop %v596
    %v601 = vmul.f32 %v597, 0.5
    %v602 = vmul.f32 %v598, 0.5
    %v603 = vmul.f32 %v599, 0.5
    %v604 = vadd.f32 %v601, 0.5
    %v605 = vadd.f32 %v602, 0.5
    %v606 = vadd.f32 %v603, 0.5
    %v608 = vrot.slane %v495, 7
    %v610 = vmul.f32 %v605, %v608
    %v611 = vmul.f32 %v604, %v600
    %v612 = vadd.f32 %v610, %v611
    %v613 = vtanh.pop %v612
    %v614 = vmul.f32 %v606, %v613
    %v616 = vrot.slane %v614, 4
    %618 = vmatpush.msra.mxu0 %v103
    %619 = vmatpush.msra.mxu0 %v99
    %620 = vmatpush.msra.mxu0 %v95
    %621 = vmatpush.msra.mxu0 %v91
    %622 = vmatpush.msra.mxu0 %v87
    %623 = vmatpush.msra.mxu0 %v83
    %624 = vmatpush.msra.mxu0 %v79
    %625 = vmatpush.msra.mxu0 %v75
    %626 = vmatpush.msra.mxu0 %v71
    %627 = vmatpush.msra.mxu0 %v67
    %628 = vmatpush.msra.mxu0 %v63
    %629 = vmatpush.msra.mxu0 %v59
    %630 = vmatpush.msra.mxu0 %v55
    %631 = vmatpush.msra.mxu0 %v51
    %632 = vmatpush.msra.mxu0 %v47
    %633 = vmatpush.msra.mxu0 %v43
    %634 = vmatmul.f32.gmra.mxu0 %v616
    %v635 = vpop.f32.mrf.mxu0
    %v636 = vadd.f32 0.0, %v635
    %637 = vdwg.mxu0
    %638 = vmatpush.msra.mxu0 %v104
    %639 = vmatpush.msra.mxu0 %v100
    %640 = vmatpush.msra.mxu0 %v96
    %641 = vmatpush.msra.mxu0 %v92
    %642 = vmatpush.msra.mxu0 %v88
    %643 = vmatpush.msra.mxu0 %v84
    %644 = vmatpush.msra.mxu0 %v80
    %645 = vmatpush.msra.mxu0 %v76
    %646 = vmatpush.msra.mxu0 %v72
    %647 = vmatpush.msra.mxu0 %v68
    %648 = vmatpush.msra.mxu0 %v64
    %649 = vmatpush.msra.mxu0 %v60
    %650 = vmatpush.msra.mxu0 %v56
    %651 = vmatpush.msra.mxu0 %v52
    %652 = vmatpush.msra.mxu0 %v48
    %653 = vmatpush.msra.mxu0 %v44
    %654 = vmatmul.f32.gmra.mxu0 %v616
    %v655 = vpop.f32.mrf.mxu0
    %v656 = vadd.f32 0.0, %v655
    %657 = vdwg.mxu0
    %658 = vmatpush.msra.mxu0 %v105
    %659 = vmatpush.msra.mxu0 %v101
    %660 = vmatpush.msra.mxu0 %v97
    %661 = vmatpush.msra.mxu0 %v93
    %662 = vmatpush.msra.mxu0 %v89
    %663 = vmatpush.msra.mxu0 %v85
    %664 = vmatpush.msra.mxu0 %v81
    %665 = vmatpush.msra.mxu0 %v77
    %666 = vmatpush.msra.mxu0 %v73
    %667 = vmatpush.msra.mxu0 %v69
    %668 = vmatpush.msra.mxu0 %v65
    %669 = vmatpush.msra.mxu0 %v61
    %670 = vmatpush.msra.mxu0 %v57
    %671 = vmatpush.msra.mxu0 %v53
    %672 = vmatpush.msra.mxu0 %v49
    %673 = vmatpush.msra.mxu0 %v45
    %674 = vmatmul.f32.gmra.mxu0 %v616
    %v675 = vpop.f32.mrf.mxu0
    %v676 = vadd.f32 0.0, %v675
    %677 = vdwg.mxu0
    %678 = vmatpush.msra.mxu0 %v106
    %679 = vmatpush.msra.mxu0 %v102
    %680 = vmatpush.msra.mxu0 %v98
    %681 = vmatpush.msra.mxu0 %v94
    %682 = vmatpush.msra.mxu0 %v90
    %683 = vmatpush.msra.mxu0 %v86
    %684 = vmatpush.msra.mxu0 %v82
    %685 = vmatpush.msra.mxu0 %v78
    %686 = vmatpush.msra.mxu0 %v74
    %687 = vmatpush.msra.mxu0 %v70
    %688 = vmatpush.msra.mxu0 %v66
    %689 = vmatpush.msra.mxu0 %v62
    %690 = vmatpush.msra.mxu0 %v58
    %691 = vmatpush.msra.mxu0 %v54
    %692 = vmatpush.msra.mxu0 %v50
    %693 = vmatpush.msra.mxu0 %v46
    %694 = vmatmul.f32.gmra.mxu0 %v616
    %v695 = vpop.f32.mrf.mxu0
    %v696 = vadd.f32 0.0, %v695
    %697 = vdwg.mxu0
    %v702 = vrot.slane %v636, 3
    %v703 = vrot.slane %v656, 3
    %v704 = vrot.slane %v676, 3
    %v705 = vrot.slane %v696, 3
    %v710 = vadd.f32 %v136, %v702
    %v711 = vadd.f32 %v137, %v703
    %v712 = vadd.f32 %v138, %v704
    %v713 = vadd.f32 %v139, %v705
    %v714 = vtanh.pop %v710
    %v715 = vtanh.pop %v711
    %v716 = vtanh.pop %v712
    %v717 = vtanh.pop %v713
    %v718 = vmul.f32 %v714, 0.5
    %v719 = vmul.f32 %v715, 0.5
    %v720 = vmul.f32 %v716, 0.5
    %v721 = vadd.f32 %v718, 0.5
    %v722 = vadd.f32 %v719, 0.5
    %v723 = vadd.f32 %v720, 0.5
    %v725 = vrot.slane %v612, 7
    %v727 = vmul.f32 %v722, %v725
    %v728 = vmul.f32 %v721, %v717
    %v729 = vadd.f32 %v727, %v728
    %v730 = vtanh.pop %v729
    %v731 = vmul.f32 %v723, %v730
    %v733 = vrot.slane %v731, 5
    %735 = vmatpush.msra.mxu0 %v103
    %736 = vmatpush.msra.mxu0 %v99
    %737 = vmatpush.msra.mxu0 %v95
    %738 = vmatpush.msra.mxu0 %v91
    %739 = vmatpush.msra.mxu0 %v87
    %740 = vmatpush.msra.mxu0 %v83
    %741 = vmatpush.msra.mxu0 %v79
    %742 = vmatpush.msra.mxu0 %v75
    %743 = vmatpush.msra.mxu0 %v71
    %744 = vmatpush.msra.mxu0 %v67
    %745 = vmatpush.msra.mxu0 %v63
    %746 = vmatpush.msra.mxu0 %v59
    %747 = vmatpush.msra.mxu0 %v55
    %748 = vmatpush.msra.mxu0 %v51
    %749 = vmatpush.msra.mxu0 %v47
    %750 = vmatpush.msra.mxu0 %v43
    %751 = vmatmul.f32.gmra.mxu0 %v733
    %v752 = vpop.f32.mrf.mxu0
    %v753 = vadd.f32 0.0, %v752
    %754 = vdwg.mxu0
    %755 = vmatpush.msra.mxu0 %v104
    %756 = vmatpush.msra.mxu0 %v100
    %757 = vmatpush.msra.mxu0 %v96
    %758 = vmatpush.msra.mxu0 %v92
    %759 = vmatpush.msra.mxu0 %v88
    %760 = vmatpush.msra.mxu0 %v84
    %761 = vmatpush.msra.mxu0 %v80
    %762 = vmatpush.msra.mxu0 %v76
    %763 = vmatpush.msra.mxu0 %v72
    %764 = vmatpush.msra.mxu0 %v68
    %765 = vmatpush.msra.mxu0 %v64
    %766 = vmatpush.msra.mxu0 %v60
    %767 = vmatpush.msra.mxu0 %v56
    %768 = vmatpush.msra.mxu0 %v52
    %769 = vmatpush.msra.mxu0 %v48
    %770 = vmatpush.msra.mxu0 %v44
    %771 = vmatmul.f32.gmra.mxu0 %v733
    %v772 = vpop.f32.mrf.mxu0
    %v773 = vadd.f32 0.0, %v772
    %774 = vdwg.mxu0
    %775 = vmatpush.msra.mxu0 %v105
    %776 = vmatpush.msra.mxu0 %v101
    %777 = vmatpush.msra.mxu0 %v97
    %778 = vmatpush.msra.mxu0 %v93
    %779 = vmatpush.msra.mxu0 %v89
    %780 = vmatpush.msra.mxu0 %v85
    %781 = vmatpush.msra.mxu0 %v81
    %782 = vmatpush.msra.mxu0 %v77
    %783 = vmatpush.msra.mxu0 %v73
    %784 = vmatpush.msra.mxu0 %v69
    %785 = vmatpush.msra.mxu0 %v65
    %786 = vmatpush.msra.mxu0 %v61
    %787 = vmatpush.msra.mxu0 %v57
    %788 = vmatpush.msra.mxu0 %v53
    %789 = vmatpush.msra.mxu0 %v49
    %790 = vmatpush.msra.mxu0 %v45
    %791 = vmatmul.f32.gmra.mxu0 %v733
    %v792 = vpop.f32.mrf.mxu0
    %v793 = vadd.f32 0.0, %v792
    %794 = vdwg.mxu0
    %795 = vmatpush.msra.mxu0 %v106
    %796 = vmatpush.msra.mxu0 %v102
    %797 = vmatpush.msra.mxu0 %v98
    %798 = vmatpush.msra.mxu0 %v94
    %799 = vmatpush.msra.mxu0 %v90
    %800 = vmatpush.msra.mxu0 %v86
    %801 = vmatpush.msra.mxu0 %v82
    %802 = vmatpush.msra.mxu0 %v78
    %803 = vmatpush.msra.mxu0 %v74
    %804 = vmatpush.msra.mxu0 %v70
    %805 = vmatpush.msra.mxu0 %v66
    %806 = vmatpush.msra.mxu0 %v62
    %807 = vmatpush.msra.mxu0 %v58
    %808 = vmatpush.msra.mxu0 %v54
    %809 = vmatpush.msra.mxu0 %v50
    %810 = vmatpush.msra.mxu0 %v46
    %811 = vmatmul.f32.gmra.mxu0 %v733
    %v812 = vpop.f32.mrf.mxu0
    %v813 = vadd.f32 0.0, %v812
    %814 = vdwg.mxu0
    %v819 = vrot.slane %v753, 2
    %v820 = vrot.slane %v773, 2
    %v821 = vrot.slane %v793, 2
    %v822 = vrot.slane %v813, 2
    %v827 = vadd.f32 %v136, %v819
    %v828 = vadd.f32 %v137, %v820
    %v829 = vadd.f32 %v138, %v821
    %v830 = vadd.f32 %v139, %v822
    %v831 = vtanh.pop %v827
    %v832 = vtanh.pop %v828
    %v833 = vtanh.pop %v829
    %v834 = vtanh.pop %v830
    %v835 = vmul.f32 %v831, 0.5
    %v836 = vmul.f32 %v832, 0.5
    %v837 = vmul.f32 %v833, 0.5
    %v838 = vadd.f32 %v835, 0.5
    %v839 = vadd.f32 %v836, 0.5
    %v840 = vadd.f32 %v837, 0.5
    %v842 = vrot.slane %v729, 7
    %v844 = vmul.f32 %v839, %v842
    %v845 = vmul.f32 %v838, %v834
    %v846 = vadd.f32 %v844, %v845
    %v847 = vtanh.pop %v846
    %v848 = vmul.f32 %v840, %v847
    %v850 = vrot.slane %v848, 6
    %852 = vmatpush.msra.mxu0 %v103
    %853 = vmatpush.msra.mxu0 %v99
    %854 = vmatpush.msra.mxu0 %v95
    %855 = vmatpush.msra.mxu0 %v91
    %856 = vmatpush.msra.mxu0 %v87
    %857 = vmatpush.msra.mxu0 %v83
    %858 = vmatpush.msra.mxu0 %v79
    %859 = vmatpush.msra.mxu0 %v75
    %860 = vmatpush.msra.mxu0 %v71
    %861 = vmatpush.msra.mxu0 %v67
    %862 = vmatpush.msra.mxu0 %v63
    %863 = vmatpush.msra.mxu0 %v59
    %864 = vmatpush.msra.mxu0 %v55
    %865 = vmatpush.msra.mxu0 %v51
    %866 = vmatpush.msra.mxu0 %v47
    %867 = vmatpush.msra.mxu0 %v43
    %868 = vmatmul.f32.gmra.mxu0 %v850
    %v869 = vpop.f32.mrf.mxu0
    %v870 = vadd.f32 0.0, %v869
    %871 = vdwg.mxu0
    %872 = vmatpush.msra.mxu0 %v104
    %873 = vmatpush.msra.mxu0 %v100
    %874 = vmatpush.msra.mxu0 %v96
    %875 = vmatpush.msra.mxu0 %v92
    %876 = vmatpush.msra.mxu0 %v88
    %877 = vmatpush.msra.mxu0 %v84
    %878 = vmatpush.msra.mxu0 %v80
    %879 = vmatpush.msra.mxu0 %v76
    %880 = vmatpush.msra.mxu0 %v72
    %881 = vmatpush.msra.mxu0 %v68
    %882 = vmatpush.msra.mxu0 %v64
    %883 = vmatpush.msra.mxu0 %v60
    %884 = vmatpush.msra.mxu0 %v56
    %885 = vmatpush.msra.mxu0 %v52
    %886 = vmatpush.msra.mxu0 %v48
    %887 = vmatpush.msra.mxu0 %v44
    %888 = vmatmul.f32.gmra.mxu0 %v850
    %v889 = vpop.f32.mrf.mxu0
    %v890 = vadd.f32 0.0, %v889
    %891 = vdwg.mxu0
    %892 = vmatpush.msra.mxu0 %v105
    %893 = vmatpush.msra.mxu0 %v101
    %894 = vmatpush.msra.mxu0 %v97
    %895 = vmatpush.msra.mxu0 %v93
    %896 = vmatpush.msra.mxu0 %v89
    %897 = vmatpush.msra.mxu0 %v85
    %898 = vmatpush.msra.mxu0 %v81
    %899 = vmatpush.msra.mxu0 %v77
    %900 = vmatpush.msra.mxu0 %v73
    %901 = vmatpush.msra.mxu0 %v69
    %902 = vmatpush.msra.mxu0 %v65
    %903 = vmatpush.msra.mxu0 %v61
    %904 = vmatpush.msra.mxu0 %v57
    %905 = vmatpush.msra.mxu0 %v53
    %906 = vmatpush.msra.mxu0 %v49
    %907 = vmatpush.msra.mxu0 %v45
    %908 = vmatmul.f32.gmra.mxu0 %v850
    %v909 = vpop.f32.mrf.mxu0
    %v910 = vadd.f32 0.0, %v909
    %911 = vdwg.mxu0
    %912 = vmatpush.msra.mxu0 %v106
    %913 = vmatpush.msra.mxu0 %v102
    %914 = vmatpush.msra.mxu0 %v98
    %915 = vmatpush.msra.mxu0 %v94
    %916 = vmatpush.msra.mxu0 %v90
    %917 = vmatpush.msra.mxu0 %v86
    %918 = vmatpush.msra.mxu0 %v82
    %919 = vmatpush.msra.mxu0 %v78
    %920 = vmatpush.msra.mxu0 %v74
    %921 = vmatpush.msra.mxu0 %v70
    %922 = vmatpush.msra.mxu0 %v66
    %923 = vmatpush.msra.mxu0 %v62
    %924 = vmatpush.msra.mxu0 %v58
    %925 = vmatpush.msra.mxu0 %v54
    %926 = vmatpush.msra.mxu0 %v50
    %927 = vmatpush.msra.mxu0 %v46
    %928 = vmatmul.f32.gmra.mxu0 %v850
    %v929 = vpop.f32.mrf.mxu0
    %v930 = vadd.f32 0.0, %v929
    %931 = vdwg.mxu0
    %v936 = vrot.slane %v870, 1
    %v937 = vrot.slane %v890, 1
    %v938 = vrot.slane %v910, 1
    %v939 = vrot.slane %v930, 1
    %v944 = vadd.f32 %v136, %v936
    %v945 = vadd.f32 %v137, %v937
    %v946 = vadd.f32 %v138, %v938
    %v947 = vadd.f32 %v139, %v939
    %v948 = vtanh.pop %v944
    %v949 = vtanh.pop %v945
    %v950 = vtanh.pop %v946
    %v951 = vtanh.pop %v947
    %v952 = vmul.f32 %v948, 0.5
    %v953 = vmul.f32 %v949, 0.5
    %v954 = vmul.f32 %v950, 0.5
    %v955 = vadd.f32 %v952, 0.5
    %v956 = vadd.f32 %v953, 0.5
    %v957 = vadd.f32 %v954, 0.5
    %v959 = vrot.slane %v846, 7
    %v961 = vmul.f32 %v956, %v959
    %v962 = vmul.f32 %v955, %v951
    %v963 = vadd.f32 %v961, %v962
    %v964 = vtanh.pop %v963
    %v965 = vmul.f32 %v957, %v964
    %v966 = vld [vmem:[%s4] sm:$0x1]
    %v968 = vperm.slane %v966, 0
    %v970 = vmul.f32 %v965, %v968
    %vm971 = vcmask 1047559
    %v972 = vsel %vm971, %v970, 0.0
    %973 = vadd.xlane.f32.xlu0 %v972
    %v974 = vpop.xlane.xlu0 %973
    %v975 = vld [vmem:[#allocation2] sm:$0x1]
    %v977 = vperm.slane %v975, 0
    %v979 = vadd.f32 %v974, %v977
    %vm980 = vcmask 7175
    %981 = vst.msk [vmem:[#allocation6 - $0x7] sm:$0x80] %vm980, %v979
    // Predicated region
    $region30: #{lstm_model_forward.1} parent=1 // pred_check
      _
    $region31: #{lstm_model_forward.1} parent=1 // pred_check_branch
      %983 = sbr.rel (0) target = $region33
    $region32: #{lstm_model_forward.1} parent=1 // pred_region
      %985 = vsyncadd [#allocation5], 0
      %s987 = sshll.u32 [#allocation6], 4
      %s988 = int_to_ptr.vmem [resolvable:$true] %s987
      %s989 = sshll.u32 %s6, 4
      %s990 = int_to_ptr.hbm [resolvable:$true] %s989
      %992 = dma.vmem_to_hbm [thread:$0]  %s988, 16, %s990, [#allocation5]
    $region33: #{lstm_model_forward.1} parent=1 // pred_fallthru
      _
    // Predicated region
    $region34: #{lstm_model_forward.1} parent=1 // pred_check
      _
    $region35: #{lstm_model_forward.1} parent=1 // pred_check_branch
      %994 = sbr.rel (0) target = $region37
    $region36: #{lstm_model_forward.1} parent=1 // pred_region
      %996 = dma.done [#allocation5], 16
    $region37: #{lstm_model_forward.1} parent=1 // pred_fallthru
      _
    %997 = vsyncpa [#allocation4], 1
    %998 = vsyncpa [#allocation5], 1

</llo_original>
